<compile_context>
chip_gen: v5e
topology: v5e:2x2
jax: 0.10.0
libtpu: 0.0.40
codegen_flags: <defaults>
</compile_context>

<pallas_src>
import jax
import jax.numpy as jnp
from jax.experimental import pallas as pl
from jax.experimental.pallas import tpu as pltpu

# --- vocab setup (mirrors the PyTorch script) ---------------------------------
sentences = ['i like dog', 'jack hate coffee', 'i love milk',
             'jack study natural language process',
             'word2vec conclude skip-gram and cbow model',
             'jack like coffee', 'dog coffee milk']
word_list = ' '.join(sentences).split()
vocab = sorted(set(word_list))          # sorted for determinism
VOCAB_SIZE = len(vocab)                 # 18
EMBED_SIZE = 2

LANE = 128
VOCAB_PAD = ((VOCAB_SIZE + LANE - 1) // LANE) * LANE   # 128


# --- Pallas kernel -------------------------------------------------------------
def word2vec_kernel(x_ref, wt_ref, v_ref, o_ref):
    # x_ref : (B, VOCAB_PAD)          input, zero-padded beyond VOCAB_SIZE
    # wt_ref: (EMBED, VOCAB_PAD)      W.T, rows are lane-dense, zero-padded
    # v_ref : (EMBED, VOCAB_PAD)      V, zero-padded
    # o_ref : (B, VOCAB_PAD)          (x @ W) @ V, padded lanes are zero
    x = x_ref[...]
    wt = wt_ref[...]
    v = v_ref[...]

    embed = wt_ref.shape[0]            # 2 — statically unrolled below
    acc = None
    for e in range(embed):
        # hidden[:, e] = x @ W[:, e] : elementwise mul + lane reduction (VPU+XLU)
        h_e = jnp.sum(x * wt[e:e + 1, :], axis=-1, keepdims=True)     # (B, 1)
        # out += hidden[:, e] (x) V[e, :] : broadcast FMA on the VPU
        term = h_e * v[e:e + 1, :]                                    # (B, VOCAB_PAD)
        acc = term if acc is None else acc + term
    o_ref[...] = acc.astype(o_ref.dtype)


@jax.jit
def word2vec_forward(x, W, V):
    """x: (B, vocab), W: (vocab, embed), V: (embed, vocab) -> (B, vocab)."""
    B, vocab_size = x.shape
    pad = VOCAB_PAD - vocab_size

    # Layout plumbing only (zero-pad to a 128-lane boundary, transpose W so
    # each embedding column is a lane-dense row). No compute is hoisted.
    x_p = jnp.pad(x, ((0, 0), (0, pad)))
    wt_p = jnp.pad(W.T, ((0, 0), (0, pad)))
    v_p = jnp.pad(V, ((0, 0), (0, pad)))

    out_padded = pl.pallas_call(
        word2vec_kernel,
        out_shape=jax.ShapeDtypeStruct((B, VOCAB_PAD), jnp.float32),
        # No grid: single invocation, whole operands live in VMEM.
        in_specs=[
            pl.BlockSpec(memory_space=pltpu.MemorySpace.VMEM),
            pl.BlockSpec(memory_space=pltpu.MemorySpace.VMEM),
            pl.BlockSpec(memory_space=pltpu.MemorySpace.VMEM),
        ],
        out_specs=pl.BlockSpec(memory_space=pltpu.MemorySpace.VMEM),
    )(x_p, wt_p, v_p)

    return out_padded[:, :vocab_size]


if __name__ == "__main__":
    key = jax.random.PRNGKey(0)
    k_w, k_v, k_idx = jax.random.split(key, 3)

    # Parameters (deterministic init, same shapes as nn.Parameter(torch.randn(...)))
    W = jax.random.normal(k_w, (VOCAB_SIZE, EMBED_SIZE), dtype=jnp.float32)
    V = jax.random.normal(k_v, (EMBED_SIZE, VOCAB_SIZE), dtype=jnp.float32)

    # Example batch of one-hot inputs (as the skip-gram training loop would feed)
    batch = 8
    idx = jax.random.randint(k_idx, (batch,), 0, VOCAB_SIZE)
    x = jax.nn.one_hot(idx, VOCAB_SIZE, dtype=jnp.float32)   # (8, 18)

    out = word2vec_forward(x, W, V)
    out = jax.block_until_ready(out)

    # correctness check vs plain JAX reference
    ref = x @ W @ V
    assert out.shape == (batch, VOCAB_SIZE)
    assert jnp.allclose(out, ref, atol=1e-5, rtol=1e-5), "mismatch vs reference"

    print("KERNEL_OK")
</pallas_src>

<mosaic_0001>
module attributes {stable_mosaic.version = 11 : i64} {
  func.func @word2vec_kernel(%arg0: memref<8x128xf32, #tpu.memory_space<vmem>>, %arg1: memref<2x128xf32, #tpu.memory_space<vmem>>, %arg2: memref<2x128xf32, #tpu.memory_space<vmem>>, %arg3: memref<8x128xf32, #tpu.memory_space<vmem>>) attributes {dimension_semantics = [], scalar_prefetch = 0 : i64, scratch_operands = 0 : i64, tpu.core_type = #tpu.core_type<tc>} {
    %c0 = arith.constant 0 : index
    %c0_0 = arith.constant 0 : index
    %0 = vector.load %arg0[%c0, %c0_0] : memref<8x128xf32, #tpu.memory_space<vmem>>, vector<8x128xf32>
    %c0_1 = arith.constant 0 : index
    %c0_2 = arith.constant 0 : index
    %1 = vector.load %arg1[%c0_1, %c0_2] : memref<2x128xf32, #tpu.memory_space<vmem>>, vector<2x128xf32>
    %c0_3 = arith.constant 0 : index
    %c0_4 = arith.constant 0 : index
    %2 = vector.load %arg2[%c0_3, %c0_4] : memref<2x128xf32, #tpu.memory_space<vmem>>, vector<2x128xf32>
    %3 = vector.extract_strided_slice %1 {offsets = [0, 0], sizes = [1, 128], strides = [1, 1]} : vector<2x128xf32> to vector<1x128xf32>
    %4 = vector.broadcast %3 : vector<1x128xf32> to vector<8x128xf32>
    %5 = arith.mulf %0, %4 : vector<8x128xf32>
    %cst = arith.constant dense<0.000000e+00> : vector<8xf32>
    %6 = vector.multi_reduction <add>, %5, %cst [1] : vector<8x128xf32> to vector<8xf32>
    %7 = vector.shape_cast %6 : vector<8xf32> to vector<8x1xf32>
    %8 = vector.extract_strided_slice %2 {offsets = [0, 0], sizes = [1, 128], strides = [1, 1]} : vector<2x128xf32> to vector<1x128xf32>
    %9 = vector.broadcast %7 : vector<8x1xf32> to vector<8x128xf32>
    %10 = vector.broadcast %8 : vector<1x128xf32> to vector<8x128xf32>
    %11 = arith.mulf %9, %10 : vector<8x128xf32>
    %12 = vector.extract_strided_slice %1 {offsets = [1, 0], sizes = [1, 128], strides = [1, 1]} : vector<2x128xf32> to vector<1x128xf32>
    %13 = vector.broadcast %12 : vector<1x128xf32> to vector<8x128xf32>
    %14 = arith.mulf %0, %13 : vector<8x128xf32>
    %cst_5 = arith.constant dense<0.000000e+00> : vector<8xf32>
    %15 = vector.multi_reduction <add>, %14, %cst_5 [1] : vector<8x128xf32> to vector<8xf32>
    %16 = vector.shape_cast %15 : vector<8xf32> to vector<8x1xf32>
    %17 = vector.extract_strided_slice %2 {offsets = [1, 0], sizes = [1, 128], strides = [1, 1]} : vector<2x128xf32> to vector<1x128xf32>
    %18 = vector.broadcast %16 : vector<8x1xf32> to vector<8x128xf32>
    %19 = vector.broadcast %17 : vector<1x128xf32> to vector<8x128xf32>
    %20 = arith.mulf %18, %19 : vector<8x128xf32>
    %21 = arith.addf %11, %20 : vector<8x128xf32>
    %c0_6 = arith.constant 0 : index
    %c0_7 = arith.constant 0 : index
    %22 = vector.load %arg3[%c0_6, %c0_7] : memref<8x128xf32, #tpu.memory_space<vmem>>, vector<8x128xf32>
    tpu.vector_store %arg3[%c0_6, %c0_7], %21 {strides = array<i32>} : memref<8x128xf32, #tpu.memory_space<vmem>>, vector<8x128xf32>,
    return
  }
}

</mosaic_0001>

<llo_original>
// kernel: word2vec_forward.1
$region0: #{word2vec_forward.1}
  #allocation0 [shape = 'u32[]', space=smem, size = 0x4, offset = 0x4, fixed_abs, tag = 'smem constant byte address 0x4 - core index']
  #allocation1 [shape = 'u32[72,128]{1,0:T(1,128)}', space=vmem, size = 0x9000, scoped, tag = 'internal scratch']
  %s0 = inlined_call_operand.vmem [shape: f32[8,128], index: 0, kind: input, shape index: {}]
  %s1 = inlined_call_operand.vmem [shape: f32[2,128], index: 1, kind: input, shape index: {}]
  %s2 = inlined_call_operand.vmem [shape: f32[2,128], index: 2, kind: input, shape index: {}]
  %s3 = inlined_call_operand.hbm [shape: f32[8,128], index: 3, kind: output, shape index: {}]
  %s4 = sld [smem:[#allocation0]]
  $region22: #{word2vec_forward.1} parent=0
    _
  %s6 = ssub.s32 1, %s4
  %s7 = scalar_select 0, %s6, %s4
  $region1: #{word2vec_forward.1} parent=0
    #allocation2 [shape = 'u8[4096]{0}', space=vmem, size = 0x1000, scoped, tag = 'output window, operand 0, single buffered']
    #allocation3 [shape = 's32[1]{0}', space=sflag, size = 0x4, scoped, tag = 'scoped memory for word2vec_forward.1']
    %8 = vsyncpa [#allocation3], 0
    // Predicated region
    $region2: #{word2vec_forward.1} parent=1 // pred_check
      _
    $region3: #{word2vec_forward.1} parent=1 // pred_check_branch
      %10 = sbr.rel (0) target = $region5
    $region4: #{word2vec_forward.1} parent=1 // pred_region
      _
    $region5: #{word2vec_forward.1} parent=1 // pred_fallthru
      _
    // Predicated region
    $region6: #{word2vec_forward.1} parent=1 // pred_check
      _
    $region7: #{word2vec_forward.1} parent=1 // pred_check_branch
      %12 = sbr.rel (0) target = $region9
    $region8: #{word2vec_forward.1} parent=1 // pred_region
      _
    $region9: #{word2vec_forward.1} parent=1 // pred_fallthru
      _
    // Predicated region
    $region10: #{word2vec_forward.1} parent=1 // pred_check
      _
    $region11: #{word2vec_forward.1} parent=1 // pred_check_branch
      %14 = sbr.rel (0) target = $region13
    $region12: #{word2vec_forward.1} parent=1 // pred_region
      _
    $region13: #{word2vec_forward.1} parent=1 // pred_fallthru
      _
    %v15 = vld [vmem:[%s0] sm:$0xff]
    %v16 = vld [vmem:[%s1] sm:$0x3]
    %v17 = vld [vmem:[%s2] sm:$0x3]
    %v18 = vperm.slane %v16, 0
    %v19 = vmul.f32 %v15, %v18
    %20 = vadd.xlane.f32.xlu0 %v19
    %v21 = vpop.xlane.xlu0 %20
    %v22 = vperm.slane %v17, 0
    %v23 = vmul.f32 %v21, %v22
    %v24 = vperm.slane %v16, 1
    %v25 = vmul.f32 %v15, %v24
    %26 = vadd.xlane.f32.xlu0 %v25
    %v27 = vpop.xlane.xlu0 %26
    %v28 = vperm.slane %v17, 1
    %v29 = vmul.f32 %v27, %v28
    %v30 = vadd.f32 %v23, %v29
    %31 = vst [vmem:[#allocation2] sm:$0xff] %v30
    // Predicated region
    $region14: #{word2vec_forward.1} parent=1 // pred_check
      _
    $region15: #{word2vec_forward.1} parent=1 // pred_check_branch
      %33 = sbr.rel (0) target = $region17
    $region16: #{word2vec_forward.1} parent=1 // pred_region
      %35 = vsyncadd [#allocation3], 0
      %s37 = sshll.u32 [#allocation2], 4
      %s38 = int_to_ptr.vmem [resolvable:$true] %s37
      %s39 = sshll.u32 %s3, 4
      %s40 = int_to_ptr.hbm [resolvable:$true] %s39
      %42 = dma.vmem_to_hbm [thread:$0]  %s38, 128, %s40, [#allocation3]
    $region17: #{word2vec_forward.1} parent=1 // pred_fallthru
      _
    // Predicated region
    $region18: #{word2vec_forward.1} parent=1 // pred_check
      _
    $region19: #{word2vec_forward.1} parent=1 // pred_check_branch
      %44 = sbr.rel (0) target = $region21
    $region20: #{word2vec_forward.1} parent=1 // pred_region
      %46 = dma.done [#allocation3], 128
    $region21: #{word2vec_forward.1} parent=1 // pred_fallthru
      _
    %47 = vsyncpa [#allocation3], 1

</llo_original>
